<compile_context>
chip_gen: v6e
topology: v6e:2x2x1
jax: 0.10.0
libtpu: 0.0.40
codegen_flags: <defaults>
</compile_context>

<pallas_src>
import numpy as np
import jax
import jax.numpy as jnp
from jax.experimental import pallas as pl
from jax.experimental.pallas import tpu as pltpu

# db7 high-pass decomposition filter (same constants as the PyTorch module).
DB7_HIGH = np.array(
    [-0.07785205408506236, 0.39653931948230575, -0.7291320908465551,
     0.4697822874053586, 0.14390600392910627, -0.22403618499416572,
     -0.07130921926705004, 0.0806126091510659, 0.03802993693503463,
     -0.01657454163101562, -0.012550998556013784, 0.00042957797300470274,
     0.0018016407039998328, 0.0003537138000010399], dtype=np.float64)


def _reflect_index(i, n):
    if i < 0:
        return -i
    if i >= n:
        return 2 * n - 2 - i
    return i


def build_conv_matrix(filt, n):
    """Dense (n//2+1, n) matrix A with A @ v == F.conv2d(reflect_pad(v, 7), filt, stride=2)
    along one axis (cross-correlation semantics, reflect padding of len(filt)//2)."""
    klen = len(filt)
    pad = klen // 2
    no = n // 2 + 1
    A = np.zeros((no, n), dtype=np.float64)
    for o in range(no):
        for t in range(klen):
            j = 2 * o + t - pad
            A[o, _reflect_index(j, n)] += float(filt[t])
    return A


def _lower_median_nonneg(absx, k, per_row):
    """Exact lower median (k = (count-1)//2-th smallest) of non-negative f32 values.

    Bitwise binary search on the int32 bit patterns (order-preserving for x >= 0):
    after the 31 greedy MSB-first steps, `res` IS the bit pattern of the k-th smallest
    value, so it is bitcast back directly (no extra min/where recovery pass).

    absx: (R, Ccols) f32, non-negative.
      per_row=True  -> (R, 1) lower median of every row (channel-vectorized counts).
      per_row=False -> (1, 1) lower median over all R*Ccols elements.
    """
    bits = pltpu.bitcast(absx, jnp.int32)
    rows = absx.shape[0] if per_row else 1
    res = jnp.zeros((rows, 1), jnp.int32)
    for b in range(30, -1, -1):            # sign bit is never set for |x|
        cand = res | (1 << b)              # static constant per unrolled step
        lt = (bits < cand).astype(jnp.int32)
        if per_row:
            cnt = jnp.sum(lt, axis=1, keepdims=True)    # (R, 1): one lane-reduce, all rows
        else:
            cnt = jnp.sum(lt)                           # scalar
        res = jnp.where(cnt <= k, cand, res)
    return pltpu.bitcast(res, jnp.float32)


def _make_kron_kernel(L, C):
    k = (L - 1) // 2                       # torch.median lower-median index
    scale = np.float32(1.0 / (0.6745 * C))

    def kernel(x_ref, kt_ref, out_ref, acc_ref):
        cb = pl.program_id(1)

        @pl.when(cb == 0)
        def _init():
            acc_ref[...] = jnp.zeros((1, 1, 1), jnp.float32)

        x = x_ref[0]                                                   # (Cb, H*W)
        # One channel-batched MXU matmul: channels on the M dim, lane-dense output.
        m = jnp.dot(x, kt_ref[...], preferred_element_type=jnp.float32)   # (Cb, L)
        med = _lower_median_nonneg(jnp.abs(m), k, per_row=True)        # (Cb, 1)
        acc_ref[...] = acc_ref[...] + jnp.sum(med)

        @pl.when(cb == pl.num_programs(1) - 1)
        def _finish():
            out_ref[...] = acc_ref[...] * scale        # fused 1/(0.6745*C), single write

    return kernel


def _make_separable_kernel(Ho, Wo, C):
    k = (Ho * Wo - 1) // 2
    scale = np.float32(1.0 / (0.6745 * C))

    def kernel(x_ref, ah_ref, awt_ref, out_ref, acc_ref):
        c = pl.program_id(1)

        @pl.when(c == 0)
        def _init():
            acc_ref[...] = jnp.zeros((1, 1, 1), jnp.float32)

        xc = x_ref[0, 0]                                                    # (H, W)
        t1 = jnp.dot(ah_ref[...], xc, preferred_element_type=jnp.float32)   # (Ho, W)
        m = jnp.dot(t1, awt_ref[...], preferred_element_type=jnp.float32)   # (Ho, Wo)
        med = _lower_median_nonneg(jnp.abs(m), k, per_row=False)            # (1, 1)
        acc_ref[...] = acc_ref[...] + med

        @pl.when(c == pl.num_programs(1) - 1)
        def _finish():
            out_ref[...] = acc_ref[...] * scale

    return kernel


def _pick_channel_block(C, HW):
    """Largest channel block Cb (a divisor of C) whose double-buffered input tile stays
    within a VMEM budget.  Cb must be C itself or a multiple of 8 so the (Cb, H*W)
    block obeys the TPU (8, 128) second-minor tiling rule.  Returns None if no valid
    block exists (caller falls back to the separable path)."""
    budget = 8 * 1024 * 1024               # bytes for one double-buffered x block
    cb_max = max(1, budget // (2 * HW * 4))
    if C <= cb_max:
        return C
    ok = [d for d in range(8, int(cb_max) + 1, 8) if C % d == 0]
    return max(ok) if ok else None


_KRON_MAX_BYTES = 6 * 1024 * 1024          # keep the kron matrix comfortably inside VMEM


def wmad_estimator(x, use_kron=None):
    """x: (N, C, H, W) -> sigma: (N,) float32 (matches Wmad_estimator.forward)."""
    x = jnp.asarray(x, jnp.float32)
    N, C, H, W = x.shape
    assert H > 7 and W > 7, "reflect padding of 7 needs H, W >= 8"

    A_H = build_conv_matrix(DB7_HIGH, H)   # (Ho, H) float64
    A_W = build_conv_matrix(DB7_HIGH, W)   # (Wo, W) float64
    Ho, Wo = A_H.shape[0], A_W.shape[0]
    L, HW = Ho * Wo, H * W

    cparams = pltpu.CompilerParams(
        dimension_semantics=("parallel", "arbitrary"),
        vmem_limit_bytes=32 * 1024 * 1024)

    Cb = _pick_channel_block(C, HW)
    if use_kron is None:
        use_kron = (HW * L * 4 <= _KRON_MAX_BYTES) and (Cb is not None)

    if use_kron:
        # Fold both 1-D convs into one (H*W, Ho*Wo) matrix; x is passed pre-flattened to
        # (N, C, H*W) (a free metadata reshape in XLA) so the kernel needs no reshapes.
        Kt = np.kron(A_H, A_W).T.astype(np.float32)        # (HW, L)
        x_flat = x.reshape(N, C, HW)
        out = pl.pallas_call(
            _make_kron_kernel(L, C),
            out_shape=jax.ShapeDtypeStruct((N, 1, 1), jnp.float32),
            grid=(N, C // Cb),
            in_specs=[
                pl.BlockSpec((1, Cb, HW), lambda n, cb: (n, cb, 0)),
                pl.BlockSpec((HW, L), lambda n, cb: (0, 0)),
            ],
            out_specs=pl.BlockSpec((1, 1, 1), lambda n, cb: (n, 0, 0)),
            scratch_shapes=[pltpu.VMEM((1, 1, 1), jnp.float32)],
            compiler_params=cparams,
        )(x_flat, jnp.asarray(Kt))
    else:
        # Large-image fallback: per-(n, c) separable two-matmul path.
        out = pl.pallas_call(
            _make_separable_kernel(Ho, Wo, C),
            out_shape=jax.ShapeDtypeStruct((N, 1, 1), jnp.float32),
            grid=(N, C),
            in_specs=[
                pl.BlockSpec((1, 1, H, W), lambda n, c: (n, c, 0, 0)),
                pl.BlockSpec((Ho, H), lambda n, c: (0, 0)),
                pl.BlockSpec((W, Wo), lambda n, c: (0, 0)),
            ],
            out_specs=pl.BlockSpec((1, 1, 1), lambda n, c: (n, 0, 0)),
            scratch_shapes=[pltpu.VMEM((1, 1, 1), jnp.float32)],
            compiler_params=cparams,
        )(x, jnp.asarray(A_H.astype(np.float32)),
          jnp.asarray(np.ascontiguousarray(A_W.T).astype(np.float32)))
    return out[:, 0, 0]


def wmad_reference(x):
    """Independent float64 numpy reference of Wmad_estimator.forward."""
    x = np.asarray(x, np.float64)
    N, C, H, W = x.shape
    A_H = build_conv_matrix(DB7_HIGH, H)
    A_W = build_conv_matrix(DB7_HIGH, W)
    m = np.einsum('oh,nchw,pw->ncop', A_H, x, A_W)
    d = np.abs(m).reshape(N, C, -1)
    k = (d.shape[-1] - 1) // 2
    med = np.sort(d, axis=-1)[..., k]        # torch.median lower-median convention
    return np.mean(med / 0.6745, axis=1)


if __name__ == "__main__":
    key = jax.random.PRNGKey(0)
    x = jax.random.normal(key, (2, 4, 16, 16), dtype=jnp.float32)

    ref = wmad_reference(np.asarray(x))

    # Fast kron path (auto-selected for this shape).
    sigma = jax.block_until_ready(wmad_estimator(x))
    assert sigma.shape == (2,), sigma.shape
    assert np.allclose(np.asarray(sigma), ref, rtol=1e-4, atol=1e-5), (sigma, ref)

    # Large-image fallback path, exercised on the same small input for validation.
    sigma_sep = jax.block_until_ready(wmad_estimator(x, use_kron=False))
    assert np.allclose(np.asarray(sigma_sep), ref, rtol=1e-4, atol=1e-5), (sigma_sep, ref)

    print("KERNEL_OK")
</pallas_src>

<mosaic_0001>
module attributes {stable_mosaic.version = 11 : i64} {
  func.func @kernel(%arg0: i32, %arg1: i32, %arg2: memref<1x4x256xf32, #tpu.memory_space<vmem>>, %arg3: memref<256x81xf32, #tpu.memory_space<vmem>>, %arg4: memref<1x1x1xf32, #tpu.memory_space<vmem>>, %arg5: memref<1x1x1xf32, #tpu.memory_space<vmem>>) attributes {dimension_semantics = [#tpu.dimension_semantics<parallel>, #tpu.dimension_semantics<arbitrary>], iteration_bounds = array<i64: 2, 1>, scalar_prefetch = 0 : i64, scratch_operands = 1 : i64, tpu.core_type = #tpu.core_type<tc>, window_params = [{transform_indices = @transform_0, window_bounds = array<i64: 1, 4, 256>}, {pipeline_mode = #tpu.pipeline_mode<synchronous>, transform_indices = @transform_1, window_bounds = array<i64: 256, 81>}, {transform_indices = @transform_2, window_bounds = array<i64: 1, 1, 1>}]} {
    %c0_i32 = arith.constant 0 : i32
    %0 = arith.cmpi eq, %arg1, %c0_i32 : i32
    %1 = arith.extui %0 : i1 to i32
    %c0_i32_0 = arith.constant 0 : i32
    %2 = arith.cmpi ne, %1, %c0_i32_0 : i32
    scf.if %2 {
      %cst_76 = arith.constant 0.000000e+00 : f32
      %332 = vector.broadcast %cst_76 : f32 to vector<1x1x1xf32>
      %c0_77 = arith.constant 0 : index
      %c0_78 = arith.constant 0 : index
      %c0_79 = arith.constant 0 : index
      %333 = vector.load %arg5[%c0_77, %c0_78, %c0_79] : memref<1x1x1xf32, #tpu.memory_space<vmem>>, vector<1x1x1xf32>
      tpu.vector_store %arg5[%c0_77, %c0_78, %c0_79], %332 {strides = array<i32>} : memref<1x1x1xf32, #tpu.memory_space<vmem>>, vector<1x1x1xf32>,
    } else {
    }
    %c0 = arith.constant 0 : index
    %c0_1 = arith.constant 0 : index
    %c0_2 = arith.constant 0 : index
    %3 = vector.load %arg2[%c0, %c0_1, %c0_2] : memref<1x4x256xf32, #tpu.memory_space<vmem>>, vector<1x4x256xf32>
    %4 = vector.shape_cast %3 : vector<1x4x256xf32> to vector<4x256xf32>
    %c0_3 = arith.constant 0 : index
    %c0_4 = arith.constant 0 : index
    %5 = vector.load %arg3[%c0_3, %c0_4] : memref<256x81xf32, #tpu.memory_space<vmem>>, vector<256x81xf32>
    %cst = arith.constant dense<0.000000e+00> : vector<4x81xf32>
    %6 = tpu.matmul %4, %5, %cst {dimension_numbers = #tpu.dot_dimension_numbers<[1], [0], [0], [1], [0, 0, 1, 1], [], []>} : vector<4x256xf32>, vector<256x81xf32>, vector<4x81xf32> -> vector<4x81xf32>
    %7 = math.absf %6 : vector<4x81xf32>
    %8 = tpu.bitcast %7 : vector<4x81xf32> -> vector<4x81xi32>
    %c0_i32_5 = arith.constant 0 : i32
    %9 = vector.broadcast %c0_i32_5 : i32 to vector<4x1xi32>
    %c1073741824_i32 = arith.constant 1073741824 : i32
    %10 = vector.broadcast %c1073741824_i32 : i32 to vector<4x1xi32>
    %11 = arith.ori %9, %10 : vector<4x1xi32>
    %12 = vector.broadcast %11 : vector<4x1xi32> to vector<4x81xi32>
    %13 = arith.cmpi slt, %8, %12 : vector<4x81xi32>
    %14 = arith.extui %13 : vector<4x81xi1> to vector<4x81xi32>
    %cst_6 = arith.constant dense<0> : vector<4xi32>
    %15 = vector.multi_reduction <add>, %14, %cst_6 [1] : vector<4x81xi32> to vector<4xi32>
    %16 = vector.shape_cast %15 : vector<4xi32> to vector<4x1xi32>
    %c40_i32 = arith.constant 40 : i32
    %17 = vector.broadcast %c40_i32 : i32 to vector<4x1xi32>
    %18 = arith.cmpi sle, %16, %17 : vector<4x1xi32>
    %19 = arith.select %18, %11, %9 : vector<4x1xi1>, vector<4x1xi32>
    %c536870912_i32 = arith.constant 536870912 : i32
    %20 = vector.broadcast %c536870912_i32 : i32 to vector<4x1xi32>
    %21 = arith.ori %19, %20 : vector<4x1xi32>
    %22 = vector.broadcast %21 : vector<4x1xi32> to vector<4x81xi32>
    %23 = arith.cmpi slt, %8, %22 : vector<4x81xi32>
    %24 = arith.extui %23 : vector<4x81xi1> to vector<4x81xi32>
    %cst_7 = arith.constant dense<0> : vector<4xi32>
    %25 = vector.multi_reduction <add>, %24, %cst_7 [1] : vector<4x81xi32> to vector<4xi32>
    %26 = vector.shape_cast %25 : vector<4xi32> to vector<4x1xi32>
    %c40_i32_8 = arith.constant 40 : i32
    %27 = vector.broadcast %c40_i32_8 : i32 to vector<4x1xi32>
    %28 = arith.cmpi sle, %26, %27 : vector<4x1xi32>
    %29 = arith.select %28, %21, %19 : vector<4x1xi1>, vector<4x1xi32>
    %c268435456_i32 = arith.constant 268435456 : i32
    %30 = vector.broadcast %c268435456_i32 : i32 to vector<4x1xi32>
    %31 = arith.ori %29, %30 : vector<4x1xi32>
    %32 = vector.broadcast %31 : vector<4x1xi32> to vector<4x81xi32>
    %33 = arith.cmpi slt, %8, %32 : vector<4x81xi32>
    %34 = arith.extui %33 : vector<4x81xi1> to vector<4x81xi32>
    %cst_9 = arith.constant dense<0> : vector<4xi32>
    %35 = vector.multi_reduction <add>, %34, %cst_9 [1] : vector<4x81xi32> to vector<4xi32>
    %36 = vector.shape_cast %35 : vector<4xi32> to vector<4x1xi32>
    %c40_i32_10 = arith.constant 40 : i32
    %37 = vector.broadcast %c40_i32_10 : i32 to vector<4x1xi32>
    %38 = arith.cmpi sle, %36, %37 : vector<4x1xi32>
    %39 = arith.select %38, %31, %29 : vector<4x1xi1>, vector<4x1xi32>
    %c134217728_i32 = arith.constant 134217728 : i32
    %40 = vector.broadcast %c134217728_i32 : i32 to vector<4x1xi32>
    %41 = arith.ori %39, %40 : vector<4x1xi32>
    %42 = vector.broadcast %41 : vector<4x1xi32> to vector<4x81xi32>
    %43 = arith.cmpi slt, %8, %42 : vector<4x81xi32>
    %44 = arith.extui %43 : vector<4x81xi1> to vector<4x81xi32>
    %cst_11 = arith.constant dense<0> : vector<4xi32>
    %45 = vector.multi_reduction <add>, %44, %cst_11 [1] : vector<4x81xi32> to vector<4xi32>
    %46 = vector.shape_cast %45 : vector<4xi32> to vector<4x1xi32>
    %c40_i32_12 = arith.constant 40 : i32
    %47 = vector.broadcast %c40_i32_12 : i32 to vector<4x1xi32>
    %48 = arith.cmpi sle, %46, %47 : vector<4x1xi32>
    %49 = arith.select %48, %41, %39 : vector<4x1xi1>, vector<4x1xi32>
    %c67108864_i32 = arith.constant 67108864 : i32
    %50 = vector.broadcast %c67108864_i32 : i32 to vector<4x1xi32>
    %51 = arith.ori %49, %50 : vector<4x1xi32>
    %52 = vector.broadcast %51 : vector<4x1xi32> to vector<4x81xi32>
    %53 = arith.cmpi slt, %8, %52 : vector<4x81xi32>
    %54 = arith.extui %53 : vector<4x81xi1> to vector<4x81xi32>
    %cst_13 = arith.constant dense<0> : vector<4xi32>
    %55 = vector.multi_reduction <add>, %54, %cst_13 [1] : vector<4x81xi32> to vector<4xi32>
    %56 = vector.shape_cast %55 : vector<4xi32> to vector<4x1xi32>
    %c40_i32_14 = arith.constant 40 : i32
    %57 = vector.broadcast %c40_i32_14 : i32 to vector<4x1xi32>
    %58 = arith.cmpi sle, %56, %57 : vector<4x1xi32>
    %59 = arith.select %58, %51, %49 : vector<4x1xi1>, vector<4x1xi32>
    %c33554432_i32 = arith.constant 33554432 : i32
    %60 = vector.broadcast %c33554432_i32 : i32 to vector<4x1xi32>
    %61 = arith.ori %59, %60 : vector<4x1xi32>
    %62 = vector.broadcast %61 : vector<4x1xi32> to vector<4x81xi32>
    %63 = arith.cmpi slt, %8, %62 : vector<4x81xi32>
    %64 = arith.extui %63 : vector<4x81xi1> to vector<4x81xi32>
    %cst_15 = arith.constant dense<0> : vector<4xi32>
    %65 = vector.multi_reduction <add>, %64, %cst_15 [1] : vector<4x81xi32> to vector<4xi32>
    %66 = vector.shape_cast %65 : vector<4xi32> to vector<4x1xi32>
    %c40_i32_16 = arith.constant 40 : i32
    %67 = vector.broadcast %c40_i32_16 : i32 to vector<4x1xi32>
    %68 = arith.cmpi sle, %66, %67 : vector<4x1xi32>
    %69 = arith.select %68, %61, %59 : vector<4x1xi1>, vector<4x1xi32>
    %c16777216_i32 = arith.constant 16777216 : i32
    %70 = vector.broadcast %c16777216_i32 : i32 to vector<4x1xi32>
    %71 = arith.ori %69, %70 : vector<4x1xi32>
    %72 = vector.broadcast %71 : vector<4x1xi32> to vector<4x81xi32>
    %73 = arith.cmpi slt, %8, %72 : vector<4x81xi32>
    %74 = arith.extui %73 : vector<4x81xi1> to vector<4x81xi32>
    %cst_17 = arith.constant dense<0> : vector<4xi32>
    %75 = vector.multi_reduction <add>, %74, %cst_17 [1] : vector<4x81xi32> to vector<4xi32>
    %76 = vector.shape_cast %75 : vector<4xi32> to vector<4x1xi32>
    %c40_i32_18 = arith.constant 40 : i32
    %77 = vector.broadcast %c40_i32_18 : i32 to vector<4x1xi32>
    %78 = arith.cmpi sle, %76, %77 : vector<4x1xi32>
    %79 = arith.select %78, %71, %69 : vector<4x1xi1>, vector<4x1xi32>
    %c8388608_i32 = arith.constant 8388608 : i32
    %80 = vector.broadcast %c8388608_i32 : i32 to vector<4x1xi32>
    %81 = arith.ori %79, %80 : vector<4x1xi32>
    %82 = vector.broadcast %81 : vector<4x1xi32> to vector<4x81xi32>
    %83 = arith.cmpi slt, %8, %82 : vector<4x81xi32>
    %84 = arith.extui %83 : vector<4x81xi1> to vector<4x81xi32>
    %cst_19 = arith.constant dense<0> : vector<4xi32>
    %85 = vector.multi_reduction <add>, %84, %cst_19 [1] : vector<4x81xi32> to vector<4xi32>
    %86 = vector.shape_cast %85 : vector<4xi32> to vector<4x1xi32>
    %c40_i32_20 = arith.constant 40 : i32
    %87 = vector.broadcast %c40_i32_20 : i32 to vector<4x1xi32>
    %88 = arith.cmpi sle, %86, %87 : vector<4x1xi32>
    %89 = arith.select %88, %81, %79 : vector<4x1xi1>, vector<4x1xi32>
    %c4194304_i32 = arith.constant 4194304 : i32
    %90 = vector.broadcast %c4194304_i32 : i32 to vector<4x1xi32>
    %91 = arith.ori %89, %90 : vector<4x1xi32>
    %92 = vector.broadcast %91 : vector<4x1xi32> to vector<4x81xi32>
    %93 = arith.cmpi slt, %8, %92 : vector<4x81xi32>
    %94 = arith.extui %93 : vector<4x81xi1> to vector<4x81xi32>
    %cst_21 = arith.constant dense<0> : vector<4xi32>
    %95 = vector.multi_reduction <add>, %94, %cst_21 [1] : vector<4x81xi32> to vector<4xi32>
    %96 = vector.shape_cast %95 : vector<4xi32> to vector<4x1xi32>
    %c40_i32_22 = arith.constant 40 : i32
    %97 = vector.broadcast %c40_i32_22 : i32 to vector<4x1xi32>
    %98 = arith.cmpi sle, %96, %97 : vector<4x1xi32>
    %99 = arith.select %98, %91, %89 : vector<4x1xi1>, vector<4x1xi32>
    %c2097152_i32 = arith.constant 2097152 : i32
    %100 = vector.broadcast %c2097152_i32 : i32 to vector<4x1xi32>
    %101 = arith.ori %99, %100 : vector<4x1xi32>
    %102 = vector.broadcast %101 : vector<4x1xi32> to vector<4x81xi32>
    %103 = arith.cmpi slt, %8, %102 : vector<4x81xi32>
    %104 = arith.extui %103 : vector<4x81xi1> to vector<4x81xi32>
    %cst_23 = arith.constant dense<0> : vector<4xi32>
    %105 = vector.multi_reduction <add>, %104, %cst_23 [1] : vector<4x81xi32> to vector<4xi32>
    %106 = vector.shape_cast %105 : vector<4xi32> to vector<4x1xi32>
    %c40_i32_24 = arith.constant 40 : i32
    %107 = vector.broadcast %c40_i32_24 : i32 to vector<4x1xi32>
    %108 = arith.cmpi sle, %106, %107 : vector<4x1xi32>
    %109 = arith.select %108, %101, %99 : vector<4x1xi1>, vector<4x1xi32>
    %c1048576_i32 = arith.constant 1048576 : i32
    %110 = vector.broadcast %c1048576_i32 : i32 to vector<4x1xi32>
    %111 = arith.ori %109, %110 : vector<4x1xi32>
    %112 = vector.broadcast %111 : vector<4x1xi32> to vector<4x81xi32>
    %113 = arith.cmpi slt, %8, %112 : vector<4x81xi32>
    %114 = arith.extui %113 : vector<4x81xi1> to vector<4x81xi32>
    %cst_25 = arith.constant dense<0> : vector<4xi32>
    %115 = vector.multi_reduction <add>, %114, %cst_25 [1] : vector<4x81xi32> to vector<4xi32>
    %116 = vector.shape_cast %115 : vector<4xi32> to vector<4x1xi32>
    %c40_i32_26 = arith.constant 40 : i32
    %117 = vector.broadcast %c40_i32_26 : i32 to vector<4x1xi32>
    %118 = arith.cmpi sle, %116, %117 : vector<4x1xi32>
    %119 = arith.select %118, %111, %109 : vector<4x1xi1>, vector<4x1xi32>
    %c524288_i32 = arith.constant 524288 : i32
    %120 = vector.broadcast %c524288_i32 : i32 to vector<4x1xi32>
    %121 = arith.ori %119, %120 : vector<4x1xi32>
    %122 = vector.broadcast %121 : vector<4x1xi32> to vector<4x81xi32>
    %123 = arith.cmpi slt, %8, %122 : vector<4x81xi32>
    %124 = arith.extui %123 : vector<4x81xi1> to vector<4x81xi32>
    %cst_27 = arith.constant dense<0> : vector<4xi32>
    %125 = vector.multi_reduction <add>, %124, %cst_27 [1] : vector<4x81xi32> to vector<4xi32>
    %126 = vector.shape_cast %125 : vector<4xi32> to vector<4x1xi32>
    %c40_i32_28 = arith.constant 40 : i32
    %127 = vector.broadcast %c40_i32_28 : i32 to vector<4x1xi32>
    %128 = arith.cmpi sle, %126, %127 : vector<4x1xi32>
    %129 = arith.select %128, %121, %119 : vector<4x1xi1>, vector<4x1xi32>
    %c262144_i32 = arith.constant 262144 : i32
    %130 = vector.broadcast %c262144_i32 : i32 to vector<4x1xi32>
    %131 = arith.ori %129, %130 : vector<4x1xi32>
    %132 = vector.broadcast %131 : vector<4x1xi32> to vector<4x81xi32>
    %133 = arith.cmpi slt, %8, %132 : vector<4x81xi32>
    %134 = arith.extui %133 : vector<4x81xi1> to vector<4x81xi32>
    %cst_29 = arith.constant dense<0> : vector<4xi32>
    %135 = vector.multi_reduction <add>, %134, %cst_29 [1] : vector<4x81xi32> to vector<4xi32>
    %136 = vector.shape_cast %135 : vector<4xi32> to vector<4x1xi32>
    %c40_i32_30 = arith.constant 40 : i32
    %137 = vector.broadcast %c40_i32_30 : i32 to vector<4x1xi32>
    %138 = arith.cmpi sle, %136, %137 : vector<4x1xi32>
    %139 = arith.select %138, %131, %129 : vector<4x1xi1>, vector<4x1xi32>
    %c131072_i32 = arith.constant 131072 : i32
    %140 = vector.broadcast %c131072_i32 : i32 to vector<4x1xi32>
    %141 = arith.ori %139, %140 : vector<4x1xi32>
    %142 = vector.broadcast %141 : vector<4x1xi32> to vector<4x81xi32>
    %143 = arith.cmpi slt, %8, %142 : vector<4x81xi32>
    %144 = arith.extui %143 : vector<4x81xi1> to vector<4x81xi32>
    %cst_31 = arith.constant dense<0> : vector<4xi32>
    %145 = vector.multi_reduction <add>, %144, %cst_31 [1] : vector<4x81xi32> to vector<4xi32>
    %146 = vector.shape_cast %145 : vector<4xi32> to vector<4x1xi32>
    %c40_i32_32 = arith.constant 40 : i32
    %147 = vector.broadcast %c40_i32_32 : i32 to vector<4x1xi32>
    %148 = arith.cmpi sle, %146, %147 : vector<4x1xi32>
    %149 = arith.select %148, %141, %139 : vector<4x1xi1>, vector<4x1xi32>
    %c65536_i32 = arith.constant 65536 : i32
    %150 = vector.broadcast %c65536_i32 : i32 to vector<4x1xi32>
    %151 = arith.ori %149, %150 : vector<4x1xi32>
    %152 = vector.broadcast %151 : vector<4x1xi32> to vector<4x81xi32>
    %153 = arith.cmpi slt, %8, %152 : vector<4x81xi32>
    %154 = arith.extui %153 : vector<4x81xi1> to vector<4x81xi32>
    %cst_33 = arith.constant dense<0> : vector<4xi32>
    %155 = vector.multi_reduction <add>, %154, %cst_33 [1] : vector<4x81xi32> to vector<4xi32>
    %156 = vector.shape_cast %155 : vector<4xi32> to vector<4x1xi32>
    %c40_i32_34 = arith.constant 40 : i32
    %157 = vector.broadcast %c40_i32_34 : i32 to vector<4x1xi32>
    %158 = arith.cmpi sle, %156, %157 : vector<4x1xi32>
    %159 = arith.select %158, %151, %149 : vector<4x1xi1>, vector<4x1xi32>
    %c32768_i32 = arith.constant 32768 : i32
    %160 = vector.broadcast %c32768_i32 : i32 to vector<4x1xi32>
    %161 = arith.ori %159, %160 : vector<4x1xi32>
    %162 = vector.broadcast %161 : vector<4x1xi32> to vector<4x81xi32>
    %163 = arith.cmpi slt, %8, %162 : vector<4x81xi32>
    %164 = arith.extui %163 : vector<4x81xi1> to vector<4x81xi32>
    %cst_35 = arith.constant dense<0> : vector<4xi32>
    %165 = vector.multi_reduction <add>, %164, %cst_35 [1] : vector<4x81xi32> to vector<4xi32>
    %166 = vector.shape_cast %165 : vector<4xi32> to vector<4x1xi32>
    %c40_i32_36 = arith.constant 40 : i32
    %167 = vector.broadcast %c40_i32_36 : i32 to vector<4x1xi32>
    %168 = arith.cmpi sle, %166, %167 : vector<4x1xi32>
    %169 = arith.select %168, %161, %159 : vector<4x1xi1>, vector<4x1xi32>
    %c16384_i32 = arith.constant 16384 : i32
    %170 = vector.broadcast %c16384_i32 : i32 to vector<4x1xi32>
    %171 = arith.ori %169, %170 : vector<4x1xi32>
    %172 = vector.broadcast %171 : vector<4x1xi32> to vector<4x81xi32>
    %173 = arith.cmpi slt, %8, %172 : vector<4x81xi32>
    %174 = arith.extui %173 : vector<4x81xi1> to vector<4x81xi32>
    %cst_37 = arith.constant dense<0> : vector<4xi32>
    %175 = vector.multi_reduction <add>, %174, %cst_37 [1] : vector<4x81xi32> to vector<4xi32>
    %176 = vector.shape_cast %175 : vector<4xi32> to vector<4x1xi32>
    %c40_i32_38 = arith.constant 40 : i32
    %177 = vector.broadcast %c40_i32_38 : i32 to vector<4x1xi32>
    %178 = arith.cmpi sle, %176, %177 : vector<4x1xi32>
    %179 = arith.select %178, %171, %169 : vector<4x1xi1>, vector<4x1xi32>
    %c8192_i32 = arith.constant 8192 : i32
    %180 = vector.broadcast %c8192_i32 : i32 to vector<4x1xi32>
    %181 = arith.ori %179, %180 : vector<4x1xi32>
    %182 = vector.broadcast %181 : vector<4x1xi32> to vector<4x81xi32>
    %183 = arith.cmpi slt, %8, %182 : vector<4x81xi32>
    %184 = arith.extui %183 : vector<4x81xi1> to vector<4x81xi32>
    %cst_39 = arith.constant dense<0> : vector<4xi32>
    %185 = vector.multi_reduction <add>, %184, %cst_39 [1] : vector<4x81xi32> to vector<4xi32>
    %186 = vector.shape_cast %185 : vector<4xi32> to vector<4x1xi32>
    %c40_i32_40 = arith.constant 40 : i32
    %187 = vector.broadcast %c40_i32_40 : i32 to vector<4x1xi32>
    %188 = arith.cmpi sle, %186, %187 : vector<4x1xi32>
    %189 = arith.select %188, %181, %179 : vector<4x1xi1>, vector<4x1xi32>
    %c4096_i32 = arith.constant 4096 : i32
    %190 = vector.broadcast %c4096_i32 : i32 to vector<4x1xi32>
    %191 = arith.ori %189, %190 : vector<4x1xi32>
    %192 = vector.broadcast %191 : vector<4x1xi32> to vector<4x81xi32>
    %193 = arith.cmpi slt, %8, %192 : vector<4x81xi32>
    %194 = arith.extui %193 : vector<4x81xi1> to vector<4x81xi32>
    %cst_41 = arith.constant dense<0> : vector<4xi32>
    %195 = vector.multi_reduction <add>, %194, %cst_41 [1] : vector<4x81xi32> to vector<4xi32>
    %196 = vector.shape_cast %195 : vector<4xi32> to vector<4x1xi32>
    %c40_i32_42 = arith.constant 40 : i32
    %197 = vector.broadcast %c40_i32_42 : i32 to vector<4x1xi32>
    %198 = arith.cmpi sle, %196, %197 : vector<4x1xi32>
    %199 = arith.select %198, %191, %189 : vector<4x1xi1>, vector<4x1xi32>
    %c2048_i32 = arith.constant 2048 : i32
    %200 = vector.broadcast %c2048_i32 : i32 to vector<4x1xi32>
    %201 = arith.ori %199, %200 : vector<4x1xi32>
    %202 = vector.broadcast %201 : vector<4x1xi32> to vector<4x81xi32>
    %203 = arith.cmpi slt, %8, %202 : vector<4x81xi32>
    %204 = arith.extui %203 : vector<4x81xi1> to vector<4x81xi32>
    %cst_43 = arith.constant dense<0> : vector<4xi32>
    %205 = vector.multi_reduction <add>, %204, %cst_43 [1] : vector<4x81xi32> to vector<4xi32>
    %206 = vector.shape_cast %205 : vector<4xi32> to vector<4x1xi32>
    %c40_i32_44 = arith.constant 40 : i32
    %207 = vector.broadcast %c40_i32_44 : i32 to vector<4x1xi32>
    %208 = arith.cmpi sle, %206, %207 : vector<4x1xi32>
    %209 = arith.select %208, %201, %199 : vector<4x1xi1>, vector<4x1xi32>
    %c1024_i32 = arith.constant 1024 : i32
    %210 = vector.broadcast %c1024_i32 : i32 to vector<4x1xi32>
    %211 = arith.ori %209, %210 : vector<4x1xi32>
    %212 = vector.broadcast %211 : vector<4x1xi32> to vector<4x81xi32>
    %213 = arith.cmpi slt, %8, %212 : vector<4x81xi32>
    %214 = arith.extui %213 : vector<4x81xi1> to vector<4x81xi32>
    %cst_45 = arith.constant dense<0> : vector<4xi32>
    %215 = vector.multi_reduction <add>, %214, %cst_45 [1] : vector<4x81xi32> to vector<4xi32>
    %216 = vector.shape_cast %215 : vector<4xi32> to vector<4x1xi32>
    %c40_i32_46 = arith.constant 40 : i32
    %217 = vector.broadcast %c40_i32_46 : i32 to vector<4x1xi32>
    %218 = arith.cmpi sle, %216, %217 : vector<4x1xi32>
    %219 = arith.select %218, %211, %209 : vector<4x1xi1>, vector<4x1xi32>
    %c512_i32 = arith.constant 512 : i32
    %220 = vector.broadcast %c512_i32 : i32 to vector<4x1xi32>
    %221 = arith.ori %219, %220 : vector<4x1xi32>
    %222 = vector.broadcast %221 : vector<4x1xi32> to vector<4x81xi32>
    %223 = arith.cmpi slt, %8, %222 : vector<4x81xi32>
    %224 = arith.extui %223 : vector<4x81xi1> to vector<4x81xi32>
    %cst_47 = arith.constant dense<0> : vector<4xi32>
    %225 = vector.multi_reduction <add>, %224, %cst_47 [1] : vector<4x81xi32> to vector<4xi32>
    %226 = vector.shape_cast %225 : vector<4xi32> to vector<4x1xi32>
    %c40_i32_48 = arith.constant 40 : i32
    %227 = vector.broadcast %c40_i32_48 : i32 to vector<4x1xi32>
    %228 = arith.cmpi sle, %226, %227 : vector<4x1xi32>
    %229 = arith.select %228, %221, %219 : vector<4x1xi1>, vector<4x1xi32>
    %c256_i32 = arith.constant 256 : i32
    %230 = vector.broadcast %c256_i32 : i32 to vector<4x1xi32>
    %231 = arith.ori %229, %230 : vector<4x1xi32>
    %232 = vector.broadcast %231 : vector<4x1xi32> to vector<4x81xi32>
    %233 = arith.cmpi slt, %8, %232 : vector<4x81xi32>
    %234 = arith.extui %233 : vector<4x81xi1> to vector<4x81xi32>
    %cst_49 = arith.constant dense<0> : vector<4xi32>
    %235 = vector.multi_reduction <add>, %234, %cst_49 [1] : vector<4x81xi32> to vector<4xi32>
    %236 = vector.shape_cast %235 : vector<4xi32> to vector<4x1xi32>
    %c40_i32_50 = arith.constant 40 : i32
    %237 = vector.broadcast %c40_i32_50 : i32 to vector<4x1xi32>
    %238 = arith.cmpi sle, %236, %237 : vector<4x1xi32>
    %239 = arith.select %238, %231, %229 : vector<4x1xi1>, vector<4x1xi32>
    %c128_i32 = arith.constant 128 : i32
    %240 = vector.broadcast %c128_i32 : i32 to vector<4x1xi32>
    %241 = arith.ori %239, %240 : vector<4x1xi32>
    %242 = vector.broadcast %241 : vector<4x1xi32> to vector<4x81xi32>
    %243 = arith.cmpi slt, %8, %242 : vector<4x81xi32>
    %244 = arith.extui %243 : vector<4x81xi1> to vector<4x81xi32>
    %cst_51 = arith.constant dense<0> : vector<4xi32>
    %245 = vector.multi_reduction <add>, %244, %cst_51 [1] : vector<4x81xi32> to vector<4xi32>
    %246 = vector.shape_cast %245 : vector<4xi32> to vector<4x1xi32>
    %c40_i32_52 = arith.constant 40 : i32
    %247 = vector.broadcast %c40_i32_52 : i32 to vector<4x1xi32>
    %248 = arith.cmpi sle, %246, %247 : vector<4x1xi32>
    %249 = arith.select %248, %241, %239 : vector<4x1xi1>, vector<4x1xi32>
    %c64_i32 = arith.constant 64 : i32
    %250 = vector.broadcast %c64_i32 : i32 to vector<4x1xi32>
    %251 = arith.ori %249, %250 : vector<4x1xi32>
    %252 = vector.broadcast %251 : vector<4x1xi32> to vector<4x81xi32>
    %253 = arith.cmpi slt, %8, %252 : vector<4x81xi32>
    %254 = arith.extui %253 : vector<4x81xi1> to vector<4x81xi32>
    %cst_53 = arith.constant dense<0> : vector<4xi32>
    %255 = vector.multi_reduction <add>, %254, %cst_53 [1] : vector<4x81xi32> to vector<4xi32>
    %256 = vector.shape_cast %255 : vector<4xi32> to vector<4x1xi32>
    %c40_i32_54 = arith.constant 40 : i32
    %257 = vector.broadcast %c40_i32_54 : i32 to vector<4x1xi32>
    %258 = arith.cmpi sle, %256, %257 : vector<4x1xi32>
    %259 = arith.select %258, %251, %249 : vector<4x1xi1>, vector<4x1xi32>
    %c32_i32 = arith.constant 32 : i32
    %260 = vector.broadcast %c32_i32 : i32 to vector<4x1xi32>
    %261 = arith.ori %259, %260 : vector<4x1xi32>
    %262 = vector.broadcast %261 : vector<4x1xi32> to vector<4x81xi32>
    %263 = arith.cmpi slt, %8, %262 : vector<4x81xi32>
    %264 = arith.extui %263 : vector<4x81xi1> to vector<4x81xi32>
    %cst_55 = arith.constant dense<0> : vector<4xi32>
    %265 = vector.multi_reduction <add>, %264, %cst_55 [1] : vector<4x81xi32> to vector<4xi32>
    %266 = vector.shape_cast %265 : vector<4xi32> to vector<4x1xi32>
    %c40_i32_56 = arith.constant 40 : i32
    %267 = vector.broadcast %c40_i32_56 : i32 to vector<4x1xi32>
    %268 = arith.cmpi sle, %266, %267 : vector<4x1xi32>
    %269 = arith.select %268, %261, %259 : vector<4x1xi1>, vector<4x1xi32>
    %c16_i32 = arith.constant 16 : i32
    %270 = vector.broadcast %c16_i32 : i32 to vector<4x1xi32>
    %271 = arith.ori %269, %270 : vector<4x1xi32>
    %272 = vector.broadcast %271 : vector<4x1xi32> to vector<4x81xi32>
    %273 = arith.cmpi slt, %8, %272 : vector<4x81xi32>
    %274 = arith.extui %273 : vector<4x81xi1> to vector<4x81xi32>
    %cst_57 = arith.constant dense<0> : vector<4xi32>
    %275 = vector.multi_reduction <add>, %274, %cst_57 [1] : vector<4x81xi32> to vector<4xi32>
    %276 = vector.shape_cast %275 : vector<4xi32> to vector<4x1xi32>
    %c40_i32_58 = arith.constant 40 : i32
    %277 = vector.broadcast %c40_i32_58 : i32 to vector<4x1xi32>
    %278 = arith.cmpi sle, %276, %277 : vector<4x1xi32>
    %279 = arith.select %278, %271, %269 : vector<4x1xi1>, vector<4x1xi32>
    %c8_i32 = arith.constant 8 : i32
    %280 = vector.broadcast %c8_i32 : i32 to vector<4x1xi32>
    %281 = arith.ori %279, %280 : vector<4x1xi32>
    %282 = vector.broadcast %281 : vector<4x1xi32> to vector<4x81xi32>
    %283 = arith.cmpi slt, %8, %282 : vector<4x81xi32>
    %284 = arith.extui %283 : vector<4x81xi1> to vector<4x81xi32>
    %cst_59 = arith.constant dense<0> : vector<4xi32>
    %285 = vector.multi_reduction <add>, %284, %cst_59 [1] : vector<4x81xi32> to vector<4xi32>
    %286 = vector.shape_cast %285 : vector<4xi32> to vector<4x1xi32>
    %c40_i32_60 = arith.constant 40 : i32
    %287 = vector.broadcast %c40_i32_60 : i32 to vector<4x1xi32>
    %288 = arith.cmpi sle, %286, %287 : vector<4x1xi32>
    %289 = arith.select %288, %281, %279 : vector<4x1xi1>, vector<4x1xi32>
    %c4_i32 = arith.constant 4 : i32
    %290 = vector.broadcast %c4_i32 : i32 to vector<4x1xi32>
    %291 = arith.ori %289, %290 : vector<4x1xi32>
    %292 = vector.broadcast %291 : vector<4x1xi32> to vector<4x81xi32>
    %293 = arith.cmpi slt, %8, %292 : vector<4x81xi32>
    %294 = arith.extui %293 : vector<4x81xi1> to vector<4x81xi32>
    %cst_61 = arith.constant dense<0> : vector<4xi32>
    %295 = vector.multi_reduction <add>, %294, %cst_61 [1] : vector<4x81xi32> to vector<4xi32>
    %296 = vector.shape_cast %295 : vector<4xi32> to vector<4x1xi32>
    %c40_i32_62 = arith.constant 40 : i32
    %297 = vector.broadcast %c40_i32_62 : i32 to vector<4x1xi32>
    %298 = arith.cmpi sle, %296, %297 : vector<4x1xi32>
    %299 = arith.select %298, %291, %289 : vector<4x1xi1>, vector<4x1xi32>
    %c2_i32 = arith.constant 2 : i32
    %300 = vector.broadcast %c2_i32 : i32 to vector<4x1xi32>
    %301 = arith.ori %299, %300 : vector<4x1xi32>
    %302 = vector.broadcast %301 : vector<4x1xi32> to vector<4x81xi32>
    %303 = arith.cmpi slt, %8, %302 : vector<4x81xi32>
    %304 = arith.extui %303 : vector<4x81xi1> to vector<4x81xi32>
    %cst_63 = arith.constant dense<0> : vector<4xi32>
    %305 = vector.multi_reduction <add>, %304, %cst_63 [1] : vector<4x81xi32> to vector<4xi32>
    %306 = vector.shape_cast %305 : vector<4xi32> to vector<4x1xi32>
    %c40_i32_64 = arith.constant 40 : i32
    %307 = vector.broadcast %c40_i32_64 : i32 to vector<4x1xi32>
    %308 = arith.cmpi sle, %306, %307 : vector<4x1xi32>
    %309 = arith.select %308, %301, %299 : vector<4x1xi1>, vector<4x1xi32>
    %c1_i32 = arith.constant 1 : i32
    %310 = vector.broadcast %c1_i32 : i32 to vector<4x1xi32>
    %311 = arith.ori %309, %310 : vector<4x1xi32>
    %312 = vector.broadcast %311 : vector<4x1xi32> to vector<4x81xi32>
    %313 = arith.cmpi slt, %8, %312 : vector<4x81xi32>
    %314 = arith.extui %313 : vector<4x81xi1> to vector<4x81xi32>
    %cst_65 = arith.constant dense<0> : vector<4xi32>
    %315 = vector.multi_reduction <add>, %314, %cst_65 [1] : vector<4x81xi32> to vector<4xi32>
    %316 = vector.shape_cast %315 : vector<4xi32> to vector<4x1xi32>
    %c40_i32_66 = arith.constant 40 : i32
    %317 = vector.broadcast %c40_i32_66 : i32 to vector<4x1xi32>
    %318 = arith.cmpi sle, %316, %317 : vector<4x1xi32>
    %319 = arith.select %318, %311, %309 : vector<4x1xi1>, vector<4x1xi32>
    %320 = tpu.bitcast %319 : vector<4x1xi32> -> vector<4x1xf32>
    %c0_67 = arith.constant 0 : index
    %c0_68 = arith.constant 0 : index
    %c0_69 = arith.constant 0 : index
    %321 = vector.load %arg5[%c0_67, %c0_68, %c0_69] : memref<1x1x1xf32, #tpu.memory_space<vmem>>, vector<1x1x1xf32>
    %322 = vector.shape_cast %320 : vector<4x1xf32> to vector<1x4x1xf32>
    %cst_70 = arith.constant dense<0.000000e+00> : vector<1xf32>
    %323 = vector.multi_reduction <add>, %322, %cst_70 [1, 2] : vector<1x4x1xf32> to vector<1xf32>
    %324 = vector.shape_cast %323 : vector<1xf32> to vector<1x1x1xf32>
    %325 = vector.extract %324[0, 0, 0] : f32 from vector<1x1x1xf32>
    %326 = vector.broadcast %325 : f32 to vector<1x1x1xf32>
    %327 = arith.addf %321, %326 : vector<1x1x1xf32>
    %c0_71 = arith.constant 0 : index
    %c0_72 = arith.constant 0 : index
    %c0_73 = arith.constant 0 : index
    %328 = vector.load %arg5[%c0_71, %c0_72, %c0_73] : memref<1x1x1xf32, #tpu.memory_space<vmem>>, vector<1x1x1xf32>
    tpu.vector_store %arg5[%c0_71, %c0_72, %c0_73], %327 {strides = array<i32>} : memref<1x1x1xf32, #tpu.memory_space<vmem>>, vector<1x1x1xf32>,
    %c0_i32_74 = arith.constant 0 : i32
    %329 = arith.cmpi eq, %arg1, %c0_i32_74 : i32
    %330 = arith.extui %329 : i1 to i32
    %c0_i32_75 = arith.constant 0 : i32
    %331 = arith.cmpi ne, %330, %c0_i32_75 : i32
    scf.if %331 {
      %c0_76 = arith.constant 0 : index
      %c0_77 = arith.constant 0 : index
      %c0_78 = arith.constant 0 : index
      %332 = vector.load %arg5[%c0_76, %c0_77, %c0_78] : memref<1x1x1xf32, #tpu.memory_space<vmem>>, vector<1x1x1xf32>
      %cst_79 = arith.constant 0.370644927 : f32
      %333 = vector.broadcast %cst_79 : f32 to vector<1x1x1xf32>
      %334 = arith.mulf %332, %333 : vector<1x1x1xf32>
      %c0_80 = arith.constant 0 : index
      %c0_81 = arith.constant 0 : index
      %c0_82 = arith.constant 0 : index
      %335 = vector.load %arg4[%c0_80, %c0_81, %c0_82] : memref<1x1x1xf32, #tpu.memory_space<vmem>>, vector<1x1x1xf32>
      tpu.vector_store %arg4[%c0_80, %c0_81, %c0_82], %334 {strides = array<i32>} : memref<1x1x1xf32, #tpu.memory_space<vmem>>, vector<1x1x1xf32>,
    } else {
    }
    return
  }
  func.func @transform_0(%arg0: i32, %arg1: i32) -> (i32, i32, i32) {
    %c0_i32 = arith.constant 0 : i32
    %c0_i32_0 = arith.constant 0 : i32
    return %arg0, %arg1, %c0_i32 : i32, i32, i32
  }
  func.func @transform_1(%arg0: i32, %arg1: i32) -> (i32, i32) {
    %c0_i32 = arith.constant 0 : i32
    %c0_i32_0 = arith.constant 0 : i32
    %c0_i32_1 = arith.constant 0 : i32
    return %c0_i32, %c0_i32_0 : i32, i32
  }
  func.func @transform_2(%arg0: i32, %arg1: i32) -> (i32, i32, i32) {
    %c0_i32 = arith.constant 0 : i32
    %c0_i32_0 = arith.constant 0 : i32
    %c0_i32_1 = arith.constant 0 : i32
    return %arg0, %c0_i32, %c0_i32_0 : i32, i32, i32
  }
}

</mosaic_0001>

<llo_original>
// kernel: tpu_custom_call.1
$region0: #{tpu_custom_call.1}
  #allocation0 [shape = 'u32[]', space=smem, size = 0x4, offset = 0x4, fixed_abs, tag = 'smem constant byte address 0x4 - core index']
  #allocation1 [shape = 'u32[144,128]{1,0:T(1,128)}', space=vmem, size = 0x12000, scoped, tag = 'internal scratch']
  #allocation2 [shape = 'f32[1,1,1]{2,1,0:T(1,128)}', space=vmem, size = 0x200, scoped, tag = 'scratch operand']
  %s0 = inlined_call_operand.vmem [shape: f32[2,4,256], index: 0, kind: input, shape index: {}]
  %s1 = inlined_call_operand.vmem [shape: f32[256,81], index: 1, kind: input, shape index: {}]
  %s2 = inlined_call_operand.vmem [shape: f32[2,1,1], index: 2, kind: output, shape index: {}]
  %s3 = sld [smem:[#allocation0]]
  $region49: #{tpu_custom_call.1} parent=0
    _
  %s5 = ssub.s32 1, %s3
  %s6 = scalar_select 0, %s5, %s3
  loop: start=0, step=1, limit=4
  $region2: #{tpu_custom_call.1} parent=0 // loop_pre_header
    _
  $region3: #{tpu_custom_call.1} parent=0 // loop_header
    %s8 = sphi 0, %s12
    %p9 = scmp.ge.s32.totalorder %s8, 4
    %s15 = sphi 0, %s27
    %s16 = sphi 0, %s23
    %s17 = sphi 0, %s15
    %s18 = sphi 0, %s16
    %s19 = sphi 0, %s17
    %s20 = sphi 0, %s18
    %s32 = sphi 0, %s34
    %s35 = sphi 0, %s32
    %s36 = sphi 0, %s35
    %s52 = sphi 0, %s36
    %s56 = sphi 0, %s56
    %s58 = sphi 0, %s56
    %s59 = sphi 0, %s58
    %s73 = sphi 0, %s59
    %s79 = sphi 0, %s81
    %s82 = sphi 0, %s79
    %s83 = sphi 0, %s82
    %s99 = sphi 0, %s83
  $region4: #{tpu_custom_call.1} parent=0 // loop_header_branch
    %11 = sbr.rel (%p9) target = $region8
  $region5: #{tpu_custom_call.1} parent=0 // loop_body
    %s13 = ssub.s32 %s8, 1
    %s14 = ssub.s32 %s8, 2
    %s21 = sadd.s32 1, %s16
    %p22 = scmp.ge.s32.totalorder %s21, 1
    %s23 = scalar_select %p22, 0, %s21
    %s24 = sadd.s32 1, %s15
    %s25 = scalar_select %p22, %s24, %s15
    %p26 = scmp.ge.s32.totalorder %s25, 2
    %s27 = scalar_select %p26, 0, %s25
    %s28 = ssub.s32 %s15, %s27
    %s29 = ssub.s32 %s16, %s23
    %s30 = sor.u32 %s28, %s29
    %p31 = scmp.eq.s32.totalorder %s30, 0
    %s33 = sadd.s32 %s32, 1
    %s34 = scalar_select %p31, %s32, %s33
    %p37 = pneg %p31
    %p38 = scmp.eq.s32.totalorder %s8, 1
    %p39 = por %p37, %p38
    %p40 = scmp.ne.s32.totalorder %s32, %s35
    %p41 = scmp.eq.s32.totalorder %s8, 0
    %p42 = por %p40, %p41
    %p43 = scmp.ne.s32.totalorder %s32, %s35
    %p44 = scmp.eq.s32.totalorder %s13, 1
    %p45 = por %p43, %p44
    %p46 = scmp.ne.s32.totalorder %s35, %s36
    %p47 = scmp.eq.s32.totalorder %s13, 0
    %p48 = por %p46, %p47
    %p49 = scmp.ne.s32.totalorder %s35, %s36
    %p50 = scmp.eq.s32.totalorder %s14, 1
    %p51 = por %p49, %p50
    %p53 = scmp.ne.s32.totalorder %s36, %s52
    %p54 = scmp.eq.s32.totalorder %s14, 0
    %p55 = por %p53, %p54
    %s57 = sadd.s32 %s56, 1
    %p60 = scmp.eq.s32.totalorder %s8, 1
    %p61 = scmp.ne.s32.totalorder %s56, %s58
    %p62 = scmp.eq.s32.totalorder %s8, 0
    %p63 = por %p61, %p62
    %p64 = scmp.ne.s32.totalorder %s56, %s58
    %p65 = scmp.eq.s32.totalorder %s13, 1
    %p66 = por %p64, %p65
    %p67 = scmp.ne.s32.totalorder %s58, %s59
    %p68 = scmp.eq.s32.totalorder %s13, 0
    %p69 = por %p67, %p68
    %p70 = scmp.ne.s32.totalorder %s58, %s59
    %p71 = scmp.eq.s32.totalorder %s14, 1
    %p72 = por %p70, %p71
    %p74 = scmp.ne.s32.totalorder %s59, %s73
    %p75 = scmp.eq.s32.totalorder %s14, 0
    %p76 = por %p74, %p75
    %s77 = ssub.s32 %s15, %s27
    %p78 = scmp.eq.s32.totalorder %s77, 0
    %s80 = sadd.s32 %s79, 1
    %s81 = scalar_select %p78, %s79, %s80
    %p84 = pneg %p78
    %p85 = scmp.eq.s32.totalorder %s8, 1
    %p86 = por %p84, %p85
    %p87 = scmp.ne.s32.totalorder %s79, %s82
    %p88 = scmp.eq.s32.totalorder %s8, 0
    %p89 = por %p87, %p88
    %p90 = scmp.ne.s32.totalorder %s79, %s82
    %p91 = scmp.eq.s32.totalorder %s13, 1
    %p92 = por %p90, %p91
    %p93 = scmp.ne.s32.totalorder %s82, %s83
    %p94 = scmp.eq.s32.totalorder %s13, 0
    %p95 = por %p93, %p94
    %p96 = scmp.ne.s32.totalorder %s82, %s83
    %p97 = scmp.eq.s32.totalorder %s14, 1
    %p98 = por %p96, %p97
    %p100 = scmp.ne.s32.totalorder %s83, %s99
    %p101 = scmp.eq.s32.totalorder %s14, 0
    %p102 = por %p100, %p101
    %p103 = scmp.le.s32.totalorder 1, %s8
    %p104 = scmp.lt.s32.totalorder %s8, 3
    %p105 = pnand %p103, %p104
    %p106 = pneg %p105
    // Predicated region
    $region9: #{tpu_custom_call.1} parent=5 // pred_check
      _
    $region10: #{tpu_custom_call.1} parent=5 // pred_check_branch
      %108 = sbr.rel (%p105) target = $region12
    $region11: #{tpu_custom_call.1} parent=5 // pred_region
      %s109 = ssub.s32 %s8, 1
      // Predicated region
      $region13: #{tpu_custom_call.1} parent=11 // pred_check
        %p110 = pneg %p69
      $region14: #{tpu_custom_call.1} parent=11 // pred_check_branch
        %112 = sbr.rel (%p110) target = $region16
      $region15: #{tpu_custom_call.1} parent=11 // pred_region
        _
      $region16: #{tpu_custom_call.1} parent=11 // pred_fallthru
        _
    $region12: #{tpu_custom_call.1} parent=5 // pred_fallthru
      _
    %p113 = scmp.lt.s32.totalorder %s8, 2
    // Predicated region
    $region17: #{tpu_custom_call.1} parent=5 // pred_check
      %p114 = pneg %p113
    $region18: #{tpu_custom_call.1} parent=5 // pred_check_branch
      %116 = sbr.rel (%p114) target = $region20
    $region19: #{tpu_custom_call.1} parent=5 // pred_region
      // Predicated region
      $region21: #{tpu_custom_call.1} parent=19 // pred_check
        %p117 = pneg %p42
      $region22: #{tpu_custom_call.1} parent=19 // pred_check_branch
        %119 = sbr.rel (%p117) target = $region24
      $region23: #{tpu_custom_call.1} parent=19 // pred_region
        %p120 = scmp.lt.s32.totalorder %s15, 1
        %s121 = scalar_select %p120, %s15, 1
        %p122 = scmp.lt.s32.totalorder %s16, 0
        %s123 = scalar_select %p122, %s16, 0
        %s124 = smul.addr %s123, 2
        %s125 = smul.addr %s121, 2
        %s126 = sadd.s32 %s124, %s125
        %s127 = smul.addr %s126, 4
        %s128 = scalar_lea.vmem %s0, %s127
      $region24: #{tpu_custom_call.1} parent=19 // pred_fallthru
        _
    $region20: #{tpu_custom_call.1} parent=5 // pred_fallthru
      _
    %p129 = scmp.le.s32.totalorder 1, %s8
    %p130 = scmp.lt.s32.totalorder %s8, 3
    %p131 = pnand %p129, %p130
    %p132 = pneg %p131
    // Predicated region
    $region25: #{tpu_custom_call.1} parent=5 // pred_check
      _
    $region26: #{tpu_custom_call.1} parent=5 // pred_check_branch
      %134 = sbr.rel (%p131) target = $region28
    $region27: #{tpu_custom_call.1} parent=5 // pred_region
      %s135 = ssub.s32 %s8, 1
      %p136 = scmp.lt.s32.totalorder %s17, 1
      %s137 = scalar_select %p136, %s17, 1
      %p138 = scmp.lt.s32.totalorder %s18, 0
      %s139 = scalar_select %p138, %s18, 0
      %s140 = smul.addr %s139, 2
      %s141 = smul.addr %s137, 2
      %s142 = sadd.s32 %s140, %s141
      %s143 = smul.addr %s142, 4
      %s144 = scalar_lea.vmem %s0, %s143
      %p145 = pneg %p48
      %p146 = pneg %p45
      %p147 = pneg %p69
      %p148 = pneg %p66
      %p149 = pneg %p95
      %p150 = pneg %p92
      %p151 = scmp.lt.s32.totalorder %s17, 1
      %s152 = scalar_select %p151, %s17, 1
      %s153 = scalar_lea.vmem %s2, %s152
      %p154 = scmp.lt.s32.totalorder %s17, 1
      %s155 = scalar_select %p154, %s17, 1
      %p156 = scmp.lt.s32.totalorder %s18, 0
      %s157 = scalar_select %p156, %s18, 0
      %s158 = smul.addr %s157, 2
      %s159 = smul.addr %s155, 2
      %s160 = sadd.s32 %s158, %s159
      %s161 = smul.addr %s160, 4
      %s162 = scalar_lea.vmem %s0, %s161
      %p163 = scmp.lt.s32.totalorder %s17, 1
      %s164 = scalar_select %p163, %s17, 1
      %s165 = scalar_lea.vmem %s2, %s164
      %p166 = scmp.eq.s32.totalorder %s18, 0
      // Predicated region
      $region29: #{tpu_custom_call.1} parent=27 // pred_check
        %p167 = pneg %p166
      $region30: #{tpu_custom_call.1} parent=27 // pred_check_branch
        %169 = sbr.rel (%p167) target = $region32
      $region31: #{tpu_custom_call.1} parent=27 // pred_region
        %vm170 = vcmask 0
        %171 = vst.msk [vmem:[#allocation2] sm:$0x1] %vm170, 0.0
      $region32: #{tpu_custom_call.1} parent=27 // pred_fallthru
        _
      %v172 = vld [vmem:[%s162] sm:$0xff]
      %v173 = vld [vmem:[%s1] sm:$0xff]
      %v174 = vld [vmem:[%s1 + $0x8] sm:$0xff]
      %v175 = vld [vmem:[%s1 + $0x10] sm:$0xff]
      %v176 = vld [vmem:[%s1 + $0x18] sm:$0xff]
      %v177 = vld [vmem:[%s1 + $0x20] sm:$0xff]
      %v178 = vld [vmem:[%s1 + $0x28] sm:$0xff]
      %v179 = vld [vmem:[%s1 + $0x30] sm:$0xff]
      %v180 = vld [vmem:[%s1 + $0x38] sm:$0xff]
      %v181 = vld [vmem:[%s1 + $0x40] sm:$0xff]
      %v182 = vld [vmem:[%s1 + $0x48] sm:$0xff]
      %v183 = vld [vmem:[%s1 + $0x50] sm:$0xff]
      %v184 = vld [vmem:[%s1 + $0x58] sm:$0xff]
      %v185 = vld [vmem:[%s1 + $0x60] sm:$0xff]
      %v186 = vld [vmem:[%s1 + $0x68] sm:$0xff]
      %v187 = vld [vmem:[%s1 + $0x70] sm:$0xff]
      %v188 = vld [vmem:[%s1 + $0x78] sm:$0xff]
      %v189 = vld [vmem:[%s1 + $0x80] sm:$0xff]
      %v190 = vld [vmem:[%s1 + $0x88] sm:$0xff]
      %v191 = vld [vmem:[%s1 + $0x90] sm:$0xff]
      %v192 = vld [vmem:[%s1 + $0x98] sm:$0xff]
      %v193 = vld [vmem:[%s1 + $0xa0] sm:$0xff]
      %v194 = vld [vmem:[%s1 + $0xa8] sm:$0xff]
      %v195 = vld [vmem:[%s1 + $0xb0] sm:$0xff]
      %v196 = vld [vmem:[%s1 + $0xb8] sm:$0xff]
      %v197 = vld [vmem:[%s1 + $0xc0] sm:$0xff]
      %v198 = vld [vmem:[%s1 + $0xc8] sm:$0xff]
      %v199 = vld [vmem:[%s1 + $0xd0] sm:$0xff]
      %v200 = vld [vmem:[%s1 + $0xd8] sm:$0xff]
      %v201 = vld [vmem:[%s1 + $0xe0] sm:$0xff]
      %v202 = vld [vmem:[%s1 + $0xe8] sm:$0xff]
      %v203 = vld [vmem:[%s1 + $0xf0] sm:$0xff]
      %v204 = vld [vmem:[%s1 + $0xf8] sm:$0xff]
      %v206 = vcombine.high %v172, %v172
      %208 = vmatprep.subr.mxu0 0.0
      %209 = vmatpush1.msra.mxu0 %v188
      %210 = vmatprep.subr.mxu0 0.0
      %211 = vmatpush1.msra.mxu0 %v187
      %212 = vmatprep.subr.mxu0 0.0
      %213 = vmatpush1.msra.mxu0 %v186
      %214 = vmatprep.subr.mxu0 0.0
      %215 = vmatpush1.msra.mxu0 %v185
      %216 = vmatprep.subr.mxu0 0.0
      %217 = vmatpush1.msra.mxu0 %v184
      %218 = vmatprep.subr.mxu0 0.0
      %219 = vmatpush1.msra.mxu0 %v183
      %220 = vmatprep.subr.mxu0 0.0
      %221 = vmatpush1.msra.mxu0 %v182
      %222 = vmatprep.subr.mxu0 0.0
      %223 = vmatpush1.msra.mxu0 %v181
      %224 = vmatprep.subr.mxu0 0.0
      %225 = vmatpush1.msra.mxu0 %v180
      %226 = vmatprep.subr.mxu0 0.0
      %227 = vmatpush1.msra.mxu0 %v179
      %228 = vmatprep.subr.mxu0 0.0
      %229 = vmatpush1.msra.mxu0 %v178
      %230 = vmatprep.subr.mxu0 0.0
      %231 = vmatpush1.msra.mxu0 %v177
      %232 = vmatprep.subr.mxu0 0.0
      %233 = vmatpush1.msra.mxu0 %v176
      %234 = vmatprep.subr.mxu0 0.0
      %235 = vmatpush1.msra.mxu0 %v175
      %236 = vmatprep.subr.mxu0 0.0
      %237 = vmatpush1.msra.mxu0 %v174
      %238 = vmatprep.subr.mxu0 0.0
      %239 = vmatpush1.msra.mxu0 %v173
      %240 = vmatprep.subr.mxu0 0.0
      %241 = vmatpush2.msra.mxu0 %v204
      %242 = vmatprep.subr.mxu0 0.0
      %243 = vmatpush2.msra.mxu0 %v203
      %244 = vmatprep.subr.mxu0 0.0
      %245 = vmatpush2.msra.mxu0 %v202
      %246 = vmatprep.subr.mxu0 0.0
      %247 = vmatpush2.msra.mxu0 %v201
      %248 = vmatprep.subr.mxu0 0.0
      %249 = vmatpush2.msra.mxu0 %v200
      %250 = vmatprep.subr.mxu0 0.0
      %251 = vmatpush2.msra.mxu0 %v199
      %252 = vmatprep.subr.mxu0 0.0
      %253 = vmatpush2.msra.mxu0 %v198
      %254 = vmatprep.subr.mxu0 0.0
      %255 = vmatpush2.msra.mxu0 %v197
      %256 = vmatprep.subr.mxu0 0.0
      %257 = vmatpush2.msra.mxu0 %v196
      %258 = vmatprep.subr.mxu0 0.0
      %259 = vmatpush2.msra.mxu0 %v195
      %260 = vmatprep.subr.mxu0 0.0
      %261 = vmatpush2.msra.mxu0 %v194
      %262 = vmatprep.subr.mxu0 0.0
      %263 = vmatpush2.msra.mxu0 %v193
      %264 = vmatprep.subr.mxu0 0.0
      %265 = vmatpush2.msra.mxu0 %v192
      %266 = vmatprep.subr.mxu0 0.0
      %267 = vmatpush2.msra.mxu0 %v191
      %268 = vmatprep.subr.mxu0 0.0
      %269 = vmatpush2.msra.mxu0 %v190
      %270 = vmatprep.subr.mxu0 0.0
      %271 = vmatpush2.msra.mxu0 %v189
      %272 = vmatprep.mubr.f32.mxu0 %v206
      %273 = vmatmul.mubr.f32.gmra.mxu0 %v172
      %v274 = vpop.f32.mrf.mxu0
      %v275 = vadd.f32 0.0, %v274
      %v276 = vpop.f32.mrf.mxu0
      %277 = vdwg.mxu0
      %v278 = vand.u32 2147483647, %v275
      %vm280 = vcmp.lt.s32.totalorder %v278, 1073741824
      %v281 = vsel %vm280, 1, 0
      %vm282 = vcmask 658432
      %v283 = vsel %vm282, %v281, 0
      %v284 = vand.u32 %v283, 65535
      %v285 = vshrl.u32 %v283, 16
      %v286 = vcvt.s32.f32 %v284
      %v287 = vcvt.s32.f32 %v285
      %288 = vadd.xlane.f32.xlu0 %v286
      %v289 = vpop.xlane.xlu0 %288
      %290 = vadd.xlane.f32.xlu0 %v287
      %v291 = vpop.xlane.xlu0 %290
      %v292 = vcvt.f32.s32 %v289
      %v293 = vcvt.f32.s32 %v291
      %v294 = vshll.u32 %v293, 16
      %v295 = vadd.s32 %v294, %v292
      %vm296 = vcmp.le.s32.totalorder %v295, 40
      %v297 = vsel %vm296, 1073741824, 0
      %v298 = vor.u32 %v297, 536870912
      %vm299 = vcmp.lt.s32.totalorder %v278, %v298
      %v300 = vsel %vm299, 1, 0
      %v301 = vsel %vm282, %v300, 0
      %v302 = vand.u32 %v301, 65535
      %v303 = vshrl.u32 %v301, 16
      %v304 = vcvt.s32.f32 %v302
      %v305 = vcvt.s32.f32 %v303
      %306 = vadd.xlane.f32.xlu0 %v304
      %v307 = vpop.xlane.xlu0 %306
      %308 = vadd.xlane.f32.xlu0 %v305
      %v309 = vpop.xlane.xlu0 %308
      %v310 = vcvt.f32.s32 %v307
      %v311 = vcvt.f32.s32 %v309
      %v312 = vshll.u32 %v311, 16
      %v313 = vadd.s32 %v312, %v310
      %vm314 = vcmp.le.s32.totalorder %v313, 40
      %v315 = vsel %vm314, %v298, %v297
      %v316 = vor.u32 %v315, 268435456
      %vm317 = vcmp.lt.s32.totalorder %v278, %v316
      %v318 = vsel %vm317, 1, 0
      %v319 = vsel %vm282, %v318, 0
      %v320 = vand.u32 %v319, 65535
      %v321 = vshrl.u32 %v319, 16
      %v322 = vcvt.s32.f32 %v320
      %v323 = vcvt.s32.f32 %v321
      %324 = vadd.xlane.f32.xlu0 %v322
      %v325 = vpop.xlane.xlu0 %324
      %326 = vadd.xlane.f32.xlu0 %v323
      %v327 = vpop.xlane.xlu0 %326
      %v328 = vcvt.f32.s32 %v325
      %v329 = vcvt.f32.s32 %v327
      %v330 = vshll.u32 %v329, 16
      %v331 = vadd.s32 %v330, %v328
      %vm332 = vcmp.le.s32.totalorder %v331, 40
      %v333 = vsel %vm332, %v316, %v315
      %v334 = vor.u32 %v333, 134217728
      %vm335 = vcmp.lt.s32.totalorder %v278, %v334
      %v336 = vsel %vm335, 1, 0
      %v337 = vsel %vm282, %v336, 0
      %v338 = vand.u32 %v337, 65535
      %v339 = vshrl.u32 %v337, 16
      %v340 = vcvt.s32.f32 %v338
      %v341 = vcvt.s32.f32 %v339
      %342 = vadd.xlane.f32.xlu0 %v340
      %v343 = vpop.xlane.xlu0 %342
      %344 = vadd.xlane.f32.xlu0 %v341
      %v345 = vpop.xlane.xlu0 %344
      %v346 = vcvt.f32.s32 %v343
      %v347 = vcvt.f32.s32 %v345
      %v348 = vshll.u32 %v347, 16
      %v349 = vadd.s32 %v348, %v346
      %vm350 = vcmp.le.s32.totalorder %v349, 40
      %v351 = vsel %vm350, %v334, %v333
      %v352 = vor.u32 %v351, 67108864
      %vm353 = vcmp.lt.s32.totalorder %v278, %v352
      %v354 = vsel %vm353, 1, 0
      %v355 = vsel %vm282, %v354, 0
      %v356 = vand.u32 %v355, 65535
      %v357 = vshrl.u32 %v355, 16
      %v358 = vcvt.s32.f32 %v356
      %v359 = vcvt.s32.f32 %v357
      %360 = vadd.xlane.f32.xlu0 %v358
      %v361 = vpop.xlane.xlu0 %360
      %362 = vadd.xlane.f32.xlu0 %v359
      %v363 = vpop.xlane.xlu0 %362
      %v364 = vcvt.f32.s32 %v361
      %v365 = vcvt.f32.s32 %v363
      %v366 = vshll.u32 %v365, 16
      %v367 = vadd.s32 %v366, %v364
      %vm368 = vcmp.le.s32.totalorder %v367, 40
      %v369 = vsel %vm368, %v352, %v351
      %v370 = vor.u32 %v369, 33554432
      %vm371 = vcmp.lt.s32.totalorder %v278, %v370
      %v372 = vsel %vm371, 1, 0
      %v373 = vsel %vm282, %v372, 0
      %v374 = vand.u32 %v373, 65535
      %v375 = vshrl.u32 %v373, 16
      %v376 = vcvt.s32.f32 %v374
      %v377 = vcvt.s32.f32 %v375
      %378 = vadd.xlane.f32.xlu0 %v376
      %v379 = vpop.xlane.xlu0 %378
      %380 = vadd.xlane.f32.xlu0 %v377
      %v381 = vpop.xlane.xlu0 %380
      %v382 = vcvt.f32.s32 %v379
      %v383 = vcvt.f32.s32 %v381
      %v384 = vshll.u32 %v383, 16
      %v385 = vadd.s32 %v384, %v382
      %vm386 = vcmp.le.s32.totalorder %v385, 40
      %v387 = vsel %vm386, %v370, %v369
      %v388 = vor.u32 %v387, 16777216
      %vm389 = vcmp.lt.s32.totalorder %v278, %v388
      %v390 = vsel %vm389, 1, 0
      %v391 = vsel %vm282, %v390, 0
      %v392 = vand.u32 %v391, 65535
      %v393 = vshrl.u32 %v391, 16
      %v394 = vcvt.s32.f32 %v392
      %v395 = vcvt.s32.f32 %v393
      %396 = vadd.xlane.f32.xlu0 %v394
      %v397 = vpop.xlane.xlu0 %396
      %398 = vadd.xlane.f32.xlu0 %v395
      %v399 = vpop.xlane.xlu0 %398
      %v400 = vcvt.f32.s32 %v397
      %v401 = vcvt.f32.s32 %v399
      %v402 = vshll.u32 %v401, 16
      %v403 = vadd.s32 %v402, %v400
      %vm404 = vcmp.le.s32.totalorder %v403, 40
      %v405 = vsel %vm404, %v388, %v387
      %v406 = vor.u32 %v405, 8388608
      %vm407 = vcmp.lt.s32.totalorder %v278, %v406
      %v408 = vsel %vm407, 1, 0
      %v409 = vsel %vm282, %v408, 0
      %v410 = vand.u32 %v409, 65535
      %v411 = vshrl.u32 %v409, 16
      %v412 = vcvt.s32.f32 %v410
      %v413 = vcvt.s32.f32 %v411
      %414 = vadd.xlane.f32.xlu0 %v412
      %v415 = vpop.xlane.xlu0 %414
      %416 = vadd.xlane.f32.xlu0 %v413
      %v417 = vpop.xlane.xlu0 %416
      %v418 = vcvt.f32.s32 %v415
      %v419 = vcvt.f32.s32 %v417
      %v420 = vshll.u32 %v419, 16
      %v421 = vadd.s32 %v420, %v418
      %vm422 = vcmp.le.s32.totalorder %v421, 40
      %v423 = vsel %vm422, %v406, %v405
      %v424 = vor.u32 %v423, 4194304
      %vm425 = vcmp.lt.s32.totalorder %v278, %v424
      %v426 = vsel %vm425, 1, 0
      %v427 = vsel %vm282, %v426, 0
      %v428 = vand.u32 %v427, 65535
      %v429 = vshrl.u32 %v427, 16
      %v430 = vcvt.s32.f32 %v428
      %v431 = vcvt.s32.f32 %v429
      %432 = vadd.xlane.f32.xlu0 %v430
      %v433 = vpop.xlane.xlu0 %432
      %434 = vadd.xlane.f32.xlu0 %v431
      %v435 = vpop.xlane.xlu0 %434
      %v436 = vcvt.f32.s32 %v433
      %v437 = vcvt.f32.s32 %v435
      %v438 = vshll.u32 %v437, 16
      %v439 = vadd.s32 %v438, %v436
      %vm440 = vcmp.le.s32.totalorder %v439, 40
      %v441 = vsel %vm440, %v424, %v423
      %v442 = vor.u32 %v441, 2097152
      %vm443 = vcmp.lt.s32.totalorder %v278, %v442
      %v444 = vsel %vm443, 1, 0
      %v445 = vsel %vm282, %v444, 0
      %v446 = vand.u32 %v445, 65535
      %v447 = vshrl.u32 %v445, 16
      %v448 = vcvt.s32.f32 %v446
      %v449 = vcvt.s32.f32 %v447
      %450 = vadd.xlane.f32.xlu0 %v448
      %v451 = vpop.xlane.xlu0 %450
      %452 = vadd.xlane.f32.xlu0 %v449
      %v453 = vpop.xlane.xlu0 %452
      %v454 = vcvt.f32.s32 %v451
      %v455 = vcvt.f32.s32 %v453
      %v456 = vshll.u32 %v455, 16
      %v457 = vadd.s32 %v456, %v454
      %vm458 = vcmp.le.s32.totalorder %v457, 40
      %v459 = vsel %vm458, %v442, %v441
      %v460 = vor.u32 %v459, 1048576
      %vm461 = vcmp.lt.s32.totalorder %v278, %v460
      %v462 = vsel %vm461, 1, 0
      %v463 = vsel %vm282, %v462, 0
      %v464 = vand.u32 %v463, 65535
      %v465 = vshrl.u32 %v463, 16
      %v466 = vcvt.s32.f32 %v464
      %v467 = vcvt.s32.f32 %v465
      %468 = vadd.xlane.f32.xlu0 %v466
      %v469 = vpop.xlane.xlu0 %468
      %470 = vadd.xlane.f32.xlu0 %v467
      %v471 = vpop.xlane.xlu0 %470
      %v472 = vcvt.f32.s32 %v469
      %v473 = vcvt.f32.s32 %v471
      %v474 = vshll.u32 %v473, 16
      %v475 = vadd.s32 %v474, %v472
      %vm476 = vcmp.le.s32.totalorder %v475, 40
      %v477 = vsel %vm476, %v460, %v459
      %v478 = vor.u32 %v477, 524288
      %vm479 = vcmp.lt.s32.totalorder %v278, %v478
      %v480 = vsel %vm479, 1, 0
      %v481 = vsel %vm282, %v480, 0
      %v482 = vand.u32 %v481, 65535
      %v483 = vshrl.u32 %v481, 16
      %v484 = vcvt.s32.f32 %v482
      %v485 = vcvt.s32.f32 %v483
      %486 = vadd.xlane.f32.xlu0 %v484
      %v487 = vpop.xlane.xlu0 %486
      %488 = vadd.xlane.f32.xlu0 %v485
      %v489 = vpop.xlane.xlu0 %488
      %v490 = vcvt.f32.s32 %v487
      %v491 = vcvt.f32.s32 %v489
      %v492 = vshll.u32 %v491, 16
      %v493 = vadd.s32 %v492, %v490
      %vm494 = vcmp.le.s32.totalorder %v493, 40
      %v495 = vsel %vm494, %v478, %v477
      %v496 = vor.u32 %v495, 262144
      %vm497 = vcmp.lt.s32.totalorder %v278, %v496
      %v498 = vsel %vm497, 1, 0
      %v499 = vsel %vm282, %v498, 0
      %v500 = vand.u32 %v499, 65535
      %v501 = vshrl.u32 %v499, 16
      %v502 = vcvt.s32.f32 %v500
      %v503 = vcvt.s32.f32 %v501
      %504 = vadd.xlane.f32.xlu0 %v502
      %v505 = vpop.xlane.xlu0 %504
      %506 = vadd.xlane.f32.xlu0 %v503
      %v507 = vpop.xlane.xlu0 %506
      %v508 = vcvt.f32.s32 %v505
      %v509 = vcvt.f32.s32 %v507
      %v510 = vshll.u32 %v509, 16
      %v511 = vadd.s32 %v510, %v508
      %vm512 = vcmp.le.s32.totalorder %v511, 40
      %v513 = vsel %vm512, %v496, %v495
      %v514 = vor.u32 %v513, 131072
      %vm515 = vcmp.lt.s32.totalorder %v278, %v514
      %v516 = vsel %vm515, 1, 0
      %v517 = vsel %vm282, %v516, 0
      %v518 = vand.u32 %v517, 65535
      %v519 = vshrl.u32 %v517, 16
      %v520 = vcvt.s32.f32 %v518
      %v521 = vcvt.s32.f32 %v519
      %522 = vadd.xlane.f32.xlu0 %v520
      %v523 = vpop.xlane.xlu0 %522
      %524 = vadd.xlane.f32.xlu0 %v521
      %v525 = vpop.xlane.xlu0 %524
      %v526 = vcvt.f32.s32 %v523
      %v527 = vcvt.f32.s32 %v525
      %v528 = vshll.u32 %v527, 16
      %v529 = vadd.s32 %v528, %v526
      %vm530 = vcmp.le.s32.totalorder %v529, 40
      %v531 = vsel %vm530, %v514, %v513
      %v532 = vor.u32 %v531, 65536
      %vm533 = vcmp.lt.s32.totalorder %v278, %v532
      %v534 = vsel %vm533, 1, 0
      %v535 = vsel %vm282, %v534, 0
      %v536 = vand.u32 %v535, 65535
      %v537 = vshrl.u32 %v535, 16
      %v538 = vcvt.s32.f32 %v536
      %v539 = vcvt.s32.f32 %v537
      %540 = vadd.xlane.f32.xlu0 %v538
      %v541 = vpop.xlane.xlu0 %540
      %542 = vadd.xlane.f32.xlu0 %v539
      %v543 = vpop.xlane.xlu0 %542
      %v544 = vcvt.f32.s32 %v541
      %v545 = vcvt.f32.s32 %v543
      %v546 = vshll.u32 %v545, 16
      %v547 = vadd.s32 %v546, %v544
      %vm548 = vcmp.le.s32.totalorder %v547, 40
      %v549 = vsel %vm548, %v532, %v531
      %v550 = vor.u32 %v549, 32768
      %vm551 = vcmp.lt.s32.totalorder %v278, %v550
      %v552 = vsel %vm551, 1, 0
      %v553 = vsel %vm282, %v552, 0
      %v554 = vand.u32 %v553, 65535
      %v555 = vshrl.u32 %v553, 16
      %v556 = vcvt.s32.f32 %v554
      %v557 = vcvt.s32.f32 %v555
      %558 = vadd.xlane.f32.xlu0 %v556
      %v559 = vpop.xlane.xlu0 %558
      %560 = vadd.xlane.f32.xlu0 %v557
      %v561 = vpop.xlane.xlu0 %560
      %v562 = vcvt.f32.s32 %v559
      %v563 = vcvt.f32.s32 %v561
      %v564 = vshll.u32 %v563, 16
      %v565 = vadd.s32 %v564, %v562
      %vm566 = vcmp.le.s32.totalorder %v565, 40
      %v567 = vsel %vm566, %v550, %v549
      %v568 = vor.u32 %v567, 16384
      %vm569 = vcmp.lt.s32.totalorder %v278, %v568
      %v570 = vsel %vm569, 1, 0
      %v571 = vsel %vm282, %v570, 0
      %v572 = vand.u32 %v571, 65535
      %v573 = vshrl.u32 %v571, 16
      %v574 = vcvt.s32.f32 %v572
      %v575 = vcvt.s32.f32 %v573
      %576 = vadd.xlane.f32.xlu0 %v574
      %v577 = vpop.xlane.xlu0 %576
      %578 = vadd.xlane.f32.xlu0 %v575
      %v579 = vpop.xlane.xlu0 %578
      %v580 = vcvt.f32.s32 %v577
      %v581 = vcvt.f32.s32 %v579
      %v582 = vshll.u32 %v581, 16
      %v583 = vadd.s32 %v582, %v580
      %vm584 = vcmp.le.s32.totalorder %v583, 40
      %v585 = vsel %vm584, %v568, %v567
      %v586 = vor.u32 %v585, 8192
      %vm587 = vcmp.lt.s32.totalorder %v278, %v586
      %v588 = vsel %vm587, 1, 0
      %v589 = vsel %vm282, %v588, 0
      %v590 = vand.u32 %v589, 65535
      %v591 = vshrl.u32 %v589, 16
      %v592 = vcvt.s32.f32 %v590
      %v593 = vcvt.s32.f32 %v591
      %594 = vadd.xlane.f32.xlu0 %v592
      %v595 = vpop.xlane.xlu0 %594
      %596 = vadd.xlane.f32.xlu0 %v593
      %v597 = vpop.xlane.xlu0 %596
      %v598 = vcvt.f32.s32 %v595
      %v599 = vcvt.f32.s32 %v597
      %v600 = vshll.u32 %v599, 16
      %v601 = vadd.s32 %v600, %v598
      %vm602 = vcmp.le.s32.totalorder %v601, 40
      %v603 = vsel %vm602, %v586, %v585
      %v604 = vor.u32 %v603, 4096
      %vm605 = vcmp.lt.s32.totalorder %v278, %v604
      %v606 = vsel %vm605, 1, 0
      %v607 = vsel %vm282, %v606, 0
      %v608 = vand.u32 %v607, 65535
      %v609 = vshrl.u32 %v607, 16
      %v610 = vcvt.s32.f32 %v608
      %v611 = vcvt.s32.f32 %v609
      %612 = vadd.xlane.f32.xlu0 %v610
      %v613 = vpop.xlane.xlu0 %612
      %614 = vadd.xlane.f32.xlu0 %v611
      %v615 = vpop.xlane.xlu0 %614
      %v616 = vcvt.f32.s32 %v613
      %v617 = vcvt.f32.s32 %v615
      %v618 = vshll.u32 %v617, 16
      %v619 = vadd.s32 %v618, %v616
      %vm620 = vcmp.le.s32.totalorder %v619, 40
      %v621 = vsel %vm620, %v604, %v603
      %v622 = vor.u32 %v621, 2048
      %vm623 = vcmp.lt.s32.totalorder %v278, %v622
      %v624 = vsel %vm623, 1, 0
      %v625 = vsel %vm282, %v624, 0
      %v626 = vand.u32 %v625, 65535
      %v627 = vshrl.u32 %v625, 16
      %v628 = vcvt.s32.f32 %v626
      %v629 = vcvt.s32.f32 %v627
      %630 = vadd.xlane.f32.xlu0 %v628
      %v631 = vpop.xlane.xlu0 %630
      %632 = vadd.xlane.f32.xlu0 %v629
      %v633 = vpop.xlane.xlu0 %632
      %v634 = vcvt.f32.s32 %v631
      %v635 = vcvt.f32.s32 %v633
      %v636 = vshll.u32 %v635, 16
      %v637 = vadd.s32 %v636, %v634
      %vm638 = vcmp.le.s32.totalorder %v637, 40
      %v639 = vsel %vm638, %v622, %v621
      %v640 = vor.u32 %v639, 1024
      %vm641 = vcmp.lt.s32.totalorder %v278, %v640
      %v642 = vsel %vm641, 1, 0
      %v643 = vsel %vm282, %v642, 0
      %v644 = vand.u32 %v643, 65535
      %v645 = vshrl.u32 %v643, 16
      %v646 = vcvt.s32.f32 %v644
      %v647 = vcvt.s32.f32 %v645
      %648 = vadd.xlane.f32.xlu0 %v646
      %v649 = vpop.xlane.xlu0 %648
      %650 = vadd.xlane.f32.xlu0 %v647
      %v651 = vpop.xlane.xlu0 %650
      %v652 = vcvt.f32.s32 %v649
      %v653 = vcvt.f32.s32 %v651
      %v654 = vshll.u32 %v653, 16
      %v655 = vadd.s32 %v654, %v652
      %vm656 = vcmp.le.s32.totalorder %v655, 40
      %v657 = vsel %vm656, %v640, %v639
      %v658 = vor.u32 %v657, 512
      %vm659 = vcmp.lt.s32.totalorder %v278, %v658
      %v660 = vsel %vm659, 1, 0
      %v661 = vsel %vm282, %v660, 0
      %v662 = vand.u32 %v661, 65535
      %v663 = vshrl.u32 %v661, 16
      %v664 = vcvt.s32.f32 %v662
      %v665 = vcvt.s32.f32 %v663
      %666 = vadd.xlane.f32.xlu0 %v664
      %v667 = vpop.xlane.xlu0 %666
      %668 = vadd.xlane.f32.xlu0 %v665
      %v669 = vpop.xlane.xlu0 %668
      %v670 = vcvt.f32.s32 %v667
      %v671 = vcvt.f32.s32 %v669
      %v672 = vshll.u32 %v671, 16
      %v673 = vadd.s32 %v672, %v670
      %vm674 = vcmp.le.s32.totalorder %v673, 40
      %v675 = vsel %vm674, %v658, %v657
      %v676 = vor.u32 %v675, 256
      %vm677 = vcmp.lt.s32.totalorder %v278, %v676
      %v678 = vsel %vm677, 1, 0
      %v679 = vsel %vm282, %v678, 0
      %v680 = vand.u32 %v679, 65535
      %v681 = vshrl.u32 %v679, 16
      %v682 = vcvt.s32.f32 %v680
      %v683 = vcvt.s32.f32 %v681
      %684 = vadd.xlane.f32.xlu0 %v682
      %v685 = vpop.xlane.xlu0 %684
      %686 = vadd.xlane.f32.xlu0 %v683
      %v687 = vpop.xlane.xlu0 %686
      %v688 = vcvt.f32.s32 %v685
      %v689 = vcvt.f32.s32 %v687
      %v690 = vshll.u32 %v689, 16
      %v691 = vadd.s32 %v690, %v688
      %vm692 = vcmp.le.s32.totalorder %v691, 40
      %v693 = vsel %vm692, %v676, %v675
      %v694 = vor.u32 %v693, 128
      %vm695 = vcmp.lt.s32.totalorder %v278, %v694
      %v696 = vsel %vm695, 1, 0
      %v697 = vsel %vm282, %v696, 0
      %v698 = vand.u32 %v697, 65535
      %v699 = vshrl.u32 %v697, 16
      %v700 = vcvt.s32.f32 %v698
      %v701 = vcvt.s32.f32 %v699
      %702 = vadd.xlane.f32.xlu0 %v700
      %v703 = vpop.xlane.xlu0 %702
      %704 = vadd.xlane.f32.xlu0 %v701
      %v705 = vpop.xlane.xlu0 %704
      %v706 = vcvt.f32.s32 %v703
      %v707 = vcvt.f32.s32 %v705
      %v708 = vshll.u32 %v707, 16
      %v709 = vadd.s32 %v708, %v706
      %vm710 = vcmp.le.s32.totalorder %v709, 40
      %v711 = vsel %vm710, %v694, %v693
      %v712 = vor.u32 %v711, 64
      %vm713 = vcmp.lt.s32.totalorder %v278, %v712
      %v714 = vsel %vm713, 1, 0
      %v715 = vsel %vm282, %v714, 0
      %v716 = vand.u32 %v715, 65535
      %v717 = vshrl.u32 %v715, 16
      %v718 = vcvt.s32.f32 %v716
      %v719 = vcvt.s32.f32 %v717
      %720 = vadd.xlane.f32.xlu0 %v718
      %v721 = vpop.xlane.xlu0 %720
      %722 = vadd.xlane.f32.xlu0 %v719
      %v723 = vpop.xlane.xlu0 %722
      %v724 = vcvt.f32.s32 %v721
      %v725 = vcvt.f32.s32 %v723
      %v726 = vshll.u32 %v725, 16
      %v727 = vadd.s32 %v726, %v724
      %vm728 = vcmp.le.s32.totalorder %v727, 40
      %v729 = vsel %vm728, %v712, %v711
      %v730 = vor.u32 %v729, 32
      %vm731 = vcmp.lt.s32.totalorder %v278, %v730
      %v732 = vsel %vm731, 1, 0
      %v733 = vsel %vm282, %v732, 0
      %v734 = vand.u32 %v733, 65535
      %v735 = vshrl.u32 %v733, 16
      %v736 = vcvt.s32.f32 %v734
      %v737 = vcvt.s32.f32 %v735
      %738 = vadd.xlane.f32.xlu0 %v736
      %v739 = vpop.xlane.xlu0 %738
      %740 = vadd.xlane.f32.xlu0 %v737
      %v741 = vpop.xlane.xlu0 %740
      %v742 = vcvt.f32.s32 %v739
      %v743 = vcvt.f32.s32 %v741
      %v744 = vshll.u32 %v743, 16
      %v745 = vadd.s32 %v744, %v742
      %vm746 = vcmp.le.s32.totalorder %v745, 40
      %v747 = vsel %vm746, %v730, %v729
      %v748 = vor.u32 %v747, 16
      %vm749 = vcmp.lt.s32.totalorder %v278, %v748
      %v750 = vsel %vm749, 1, 0
      %v751 = vsel %vm282, %v750, 0
      %v752 = vand.u32 %v751, 65535
      %v753 = vshrl.u32 %v751, 16
      %v754 = vcvt.s32.f32 %v752
      %v755 = vcvt.s32.f32 %v753
      %756 = vadd.xlane.f32.xlu0 %v754
      %v757 = vpop.xlane.xlu0 %756
      %758 = vadd.xlane.f32.xlu0 %v755
      %v759 = vpop.xlane.xlu0 %758
      %v760 = vcvt.f32.s32 %v757
      %v761 = vcvt.f32.s32 %v759
      %v762 = vshll.u32 %v761, 16
      %v763 = vadd.s32 %v762, %v760
      %vm764 = vcmp.le.s32.totalorder %v763, 40
      %v765 = vsel %vm764, %v748, %v747
      %v766 = vor.u32 %v765, 8
      %vm767 = vcmp.lt.s32.totalorder %v278, %v766
      %v768 = vsel %vm767, 1, 0
      %v769 = vsel %vm282, %v768, 0
      %v770 = vand.u32 %v769, 65535
      %v771 = vshrl.u32 %v769, 16
      %v772 = vcvt.s32.f32 %v770
      %v773 = vcvt.s32.f32 %v771
      %774 = vadd.xlane.f32.xlu0 %v772
      %v775 = vpop.xlane.xlu0 %774
      %776 = vadd.xlane.f32.xlu0 %v773
      %v777 = vpop.xlane.xlu0 %776
      %v778 = vcvt.f32.s32 %v775
      %v779 = vcvt.f32.s32 %v777
      %v780 = vshll.u32 %v779, 16
      %v781 = vadd.s32 %v780, %v778
      %vm782 = vcmp.le.s32.totalorder %v781, 40
      %v783 = vsel %vm782, %v766, %v765
      %v784 = vor.u32 %v783, 4
      %vm785 = vcmp.lt.s32.totalorder %v278, %v784
      %v786 = vsel %vm785, 1, 0
      %v787 = vsel %vm282, %v786, 0
      %v788 = vand.u32 %v787, 65535
      %v789 = vshrl.u32 %v787, 16
      %v790 = vcvt.s32.f32 %v788
      %v791 = vcvt.s32.f32 %v789
      %792 = vadd.xlane.f32.xlu0 %v790
      %v793 = vpop.xlane.xlu0 %792
      %794 = vadd.xlane.f32.xlu0 %v791
      %v795 = vpop.xlane.xlu0 %794
      %v796 = vcvt.f32.s32 %v793
      %v797 = vcvt.f32.s32 %v795
      %v798 = vshll.u32 %v797, 16
      %v799 = vadd.s32 %v798, %v796
      %vm800 = vcmp.le.s32.totalorder %v799, 40
      %v801 = vsel %vm800, %v784, %v783
      %v802 = vor.u32 %v801, 2
      %vm803 = vcmp.lt.s32.totalorder %v278, %v802
      %v804 = vsel %vm803, 1, 0
      %v805 = vsel %vm282, %v804, 0
      %v806 = vand.u32 %v805, 65535
      %v807 = vshrl.u32 %v805, 16
      %v808 = vcvt.s32.f32 %v806
      %v809 = vcvt.s32.f32 %v807
      %810 = vadd.xlane.f32.xlu0 %v808
      %v811 = vpop.xlane.xlu0 %810
      %812 = vadd.xlane.f32.xlu0 %v809
      %v813 = vpop.xlane.xlu0 %812
      %v814 = vcvt.f32.s32 %v811
      %v815 = vcvt.f32.s32 %v813
      %v816 = vshll.u32 %v815, 16
      %v817 = vadd.s32 %v816, %v814
      %vm818 = vcmp.le.s32.totalorder %v817, 40
      %v819 = vsel %vm818, %v802, %v801
      %v820 = vor.u32 %v819, 1
      %vm821 = vcmp.lt.s32.totalorder %v278, %v820
      %v822 = vsel %vm821, 1, 0
      %v823 = vsel %vm282, %v822, 0
      %v824 = vand.u32 %v823, 65535
      %v825 = vshrl.u32 %v823, 16
      %v826 = vcvt.s32.f32 %v824
      %v827 = vcvt.s32.f32 %v825
      %828 = vadd.xlane.f32.xlu0 %v826
      %v829 = vpop.xlane.xlu0 %828
      %830 = vadd.xlane.f32.xlu0 %v827
      %v831 = vpop.xlane.xlu0 %830
      %v832 = vcvt.f32.s32 %v829
      %v833 = vcvt.f32.s32 %v831
      %v834 = vshll.u32 %v833, 16
      %v835 = vadd.s32 %v834, %v832
      %vm836 = vcmp.le.s32.totalorder %v835, 40
      %v837 = vsel %vm836, %v820, %v819
      %v839 = vld [vmem:[#allocation2] sm:$0x1]
      %vm840 = vcmask 3072
      %v841 = vsel %vm840, %v837, 0.0
      %842 = vadd.xlane.f32.xlu0 %v841
      %v843 = vpop.xlane.xlu0 %842
      %v844 = vrot.slane %v843, 4
      %v845 = vadd.f32 %v843, %v844
      %v846 = vrot.slane %v845, 2
      %v847 = vadd.f32 %v845, %v846
      %v848 = vrot.slane %v847, 1
      %v849 = vadd.f32 %v847, %v848
      %s850 = vtos %v849
      %v851 = vstv %s850
      %v852 = vadd.f32 %v839, %v851
      %vm853 = vcmask 0
      %854 = vst.msk [vmem:[#allocation2] sm:$0x1] %vm853, %v852
      // Predicated region
      $region33: #{tpu_custom_call.1} parent=27 // pred_check
        %p855 = pneg %p166
      $region34: #{tpu_custom_call.1} parent=27 // pred_check_branch
        %857 = sbr.rel (%p855) target = $region36
      $region35: #{tpu_custom_call.1} parent=27 // pred_region
        %v858 = vld [vmem:[#allocation2] sm:$0x1]
        %v859 = vmul.f32 %v858, 0.37064493
        %860 = vst.msk [vmem:[%s165] sm:$0x1] %vm853, %v859
      $region36: #{tpu_custom_call.1} parent=27 // pred_fallthru
        _
      %p861 = scmp.lt.s32.totalorder %s17, 1
      %s862 = scalar_select %p861, %s17, 1
      %s863 = scalar_lea.vmem %s2, %s862
      // Predicated region
      $region37: #{tpu_custom_call.1} parent=27 // pred_check
        %p864 = pneg %p92
      $region38: #{tpu_custom_call.1} parent=27 // pred_check_branch
        %866 = sbr.rel (%p864) target = $region40
      $region39: #{tpu_custom_call.1} parent=27 // pred_region
        _
      $region40: #{tpu_custom_call.1} parent=27 // pred_fallthru
        _
    $region28: #{tpu_custom_call.1} parent=5 // pred_fallthru
      _
    %p867 = scmp.le.s32.totalorder 2, %s8
    // Predicated region
    $region41: #{tpu_custom_call.1} parent=5 // pred_check
      %p868 = pneg %p867
    $region42: #{tpu_custom_call.1} parent=5 // pred_check_branch
      %870 = sbr.rel (%p868) target = $region44
    $region43: #{tpu_custom_call.1} parent=5 // pred_region
      %s871 = ssub.s32 %s8, 2
      // Predicated region
      $region45: #{tpu_custom_call.1} parent=43 // pred_check
        %p872 = pneg %p98
      $region46: #{tpu_custom_call.1} parent=43 // pred_check_branch
        %874 = sbr.rel (%p872) target = $region48
      $region47: #{tpu_custom_call.1} parent=43 // pred_region
        %p875 = scmp.lt.s32.totalorder %s19, 1
        %s876 = scalar_select %p875, %s19, 1
        %s877 = scalar_lea.vmem %s2, %s876
      $region48: #{tpu_custom_call.1} parent=43 // pred_fallthru
        _
    $region44: #{tpu_custom_call.1} parent=5 // pred_fallthru
      _
  $region6: #{tpu_custom_call.1} parent=0 // loop_footer
    %s12 = sadd.s32 1, %s8
  $region7: #{tpu_custom_call.1} parent=0 // loop_footer_branch
    %7 = sbr.rel target = $region3
  $region8: #{tpu_custom_call.1} parent=0 // loop_exit
    _

</llo_original>
